<compile_context>
chip_gen: v7x
topology: tpu7x:2x2x1
jax: 0.10.0
libtpu: 0.0.40
codegen_flags: <defaults>
</compile_context>

<pallas_src>
import functools

import jax
import jax.numpy as jnp
from jax.experimental import pallas as pl
from jax.experimental.pallas import tpu as pltpu

_LANES = 128
_SUBLANES = 8


def _chip_defaults():
    """Return (scoped-VMEM byte budget, is_v7x_class) for the local TPU."""
    phys = 128 * 1024 * 1024
    try:
        phys = int(pltpu.get_tpu_info().vmem_capacity_bytes)
    except Exception:
        pass
    if phys <= 64 * 1024 * 1024:
        # v7x-class TensorCore: 64 MiB physical VMEM (smaller budget), but
        # 2 TCs/chip make a "parallel" feature-chunk axis worthwhile.
        return 24 * 1024 * 1024, True
    # v5e / v6e: 128 MiB physical VMEM, single TensorCore.
    return 32 * 1024 * 1024, False


def _mse_kernel(i_ref, j_ref, o_ref, acc_ref, *, n_inner, s_tile, s_total, ragged):
    """Accumulate per-batch-row squared differences of one (b_tile, s_tile, 128) block."""
    k = pl.program_id(2)  # reduction axis, last in grid

    @pl.when(k == 0)
    def _():
        acc_ref[...] = jnp.zeros_like(acc_ref)

    # Cast BEFORE subtracting: avoids low-precision cancellation for bf16/fp16
    # inputs (no-op for f32).
    df = i_ref[...].astype(jnp.float32) - j_ref[...].astype(jnp.float32)
    sq = df * df

    if ragged:
        tile = pl.program_id(1) * n_inner + k          # global sublane-tile index
        remaining = s_total - tile * s_tile            # valid sublane rows here

        @pl.when(remaining >= s_tile)                  # full tile: no mask cost
        def _():
            acc_ref[...] += jnp.sum(sq, axis=1, keepdims=True)

        @pl.when(remaining < s_tile)                   # partial / padding tile
        def _():
            # jnp.where is a select, so any garbage (even NaN/Inf) in the
            # out-of-bounds part of the block is discarded.
            row = jax.lax.broadcasted_iota(jnp.int32, sq.shape, 1)
            acc_ref[...] += jnp.sum(jnp.where(row < remaining, sq, 0.0),
                                    axis=1, keepdims=True)
    else:
        acc_ref[...] += jnp.sum(sq, axis=1, keepdims=True)

    @pl.when(k == pl.num_programs(2) - 1)
    def _():
        o_ref[...] = jnp.sum(acc_ref[...], axis=2)     # (b_tile, 1) cross-lane reduce


def mean_square_error(I, J, *, weight=1.0, sum_up=False, block_bytes=None,
                      num_feature_chunks=None, max_batch_per_block=64):
    """Pallas equivalent of MeanSquareError.forward. Returns shape (B,)."""
    assert I.shape == J.shape, "I and J must have the same shape"
    B = I.shape[0]

    # Flatten all non-batch dims (glue in plain JAX).
    I2 = I.reshape(B, -1)
    J2 = J.reshape(B, -1)
    F = I2.shape[1]

    # Lane-dense view (B, S, 128).
    if F % _LANES != 0:
        # TODO(synk): the lane-ragged tail could also be masked in-kernel; this
        # minimal pad is only hit when prod(non-batch dims) % 128 != 0.
        Fp = pl.cdiv(F, _LANES) * _LANES
        I2 = jnp.pad(I2, ((0, 0), (0, Fp - F)))
        J2 = jnp.pad(J2, ((0, 0), (0, Fp - F)))
    else:
        Fp = F
    S = Fp // _LANES
    I3 = I2.reshape(B, S, _LANES)
    J3 = J2.reshape(B, S, _LANES)

    itemsize = I.dtype.itemsize
    # Align partial feature tiles to the dtype's sublane packing
    # (8 rows f32, 16 rows bf16/fp16, 32 rows int8/fp8).
    sublane_align = _SUBLANES * max(1, 4 // itemsize)

    vmem_budget, is_v7x = _chip_defaults()
    if num_feature_chunks is None:
        num_feature_chunks = 2 if is_v7x else 1   # extra chunk only pays on 2-TC chips
    n_buffers = 3 if is_v7x else 2                # 3rd buffer hides DMA jitter at 3.2 TB/s

    # Batch tiling: cap the per-block batch (multiple of 8) so VMEM never
    # scales with huge B.
    max_batch_per_block = max(_SUBLANES, (max_batch_per_block // _SUBLANES) * _SUBLANES)
    if B <= max_batch_per_block:
        b_tile = B
        n_batch = 1
    else:
        b_tile = max_batch_per_block
        n_batch = pl.cdiv(B, b_tile)

    # Per-input block byte budget: fill ~7/8 of the scoped-VMEM budget with
    # 2 inputs x n_buffers blocks; the (b_tile, 1, 128) f32 accumulator is tiny.
    acc_bytes = b_tile * _LANES * 4
    if block_bytes is None:
        block_bytes = ((vmem_budget * 7) // 8 - acc_bytes) // (2 * n_buffers)
        block_bytes = min(block_bytes, 8 * 1024 * 1024)
    block_bytes = max(block_bytes, b_tile * sublane_align * _LANES * itemsize)

    s_tile = block_bytes // (b_tile * _LANES * itemsize)
    if s_tile >= S:
        s_tile = S                                         # full-extent block (always legal)
    else:
        s_tile = max(sublane_align, (s_tile // sublane_align) * sublane_align)

    n_tiles = pl.cdiv(S, s_tile)
    n_outer = max(1, min(num_feature_chunks, n_tiles))
    n_inner = pl.cdiv(n_tiles, n_outer)
    # Invariant: padding tiles exist  =>  n_outer*n_inner*s_tile > S  =>  ragged.
    ragged = (n_outer * n_inner * s_tile != S)

    def in_map(bi, n, k):
        t = n * n_inner + k
        return (bi, jnp.minimum(t, n_tiles - 1), 0)        # keep padding tiles in-bounds

    in_block = (b_tile, s_tile, _LANES)
    if is_v7x:
        in_specs = [pl.BlockSpec(in_block, in_map, pipeline_mode=pl.Buffered(3)),
                    pl.BlockSpec(in_block, in_map, pipeline_mode=pl.Buffered(3))]
    else:
        in_specs = [pl.BlockSpec(in_block, in_map),
                    pl.BlockSpec(in_block, in_map)]

    kernel = functools.partial(_mse_kernel, n_inner=n_inner, s_tile=s_tile,
                               s_total=S, ragged=ragged)

    partials = pl.pallas_call(
        kernel,
        out_shape=jax.ShapeDtypeStruct((n_outer, B, 1), jnp.float32),
        grid_spec=pltpu.PrefetchScalarGridSpec(
            num_scalar_prefetch=0,
            grid=(n_batch, n_outer, n_inner),
            in_specs=in_specs,
            out_specs=pl.BlockSpec((None, b_tile, 1), lambda bi, n, k: (n, bi, 0)),
            scratch_shapes=[pltpu.VMEM((b_tile, 1, _LANES), jnp.float32)],
        ),
        compiler_params=pltpu.CompilerParams(
            dimension_semantics=("parallel", "parallel", "arbitrary"),
            vmem_limit_bytes=int(vmem_budget),
        ),
    )(I3, J3)

    sse = jnp.sum(partials[:, :, 0], axis=0)        # (B,) f32 partial-sum combine
    scale = weight if sum_up else weight / F        # scale applied outside kernel
    # Match PyTorch: result dtype follows the input dtype (accumulation is f32).
    return (sse * scale).astype(I.dtype)


if __name__ == "__main__":
    key = jax.random.PRNGKey(0)
    keys = jax.random.split(key, 10)

    # Primary shape implied by the module: NCHW conv-style tensors.
    B, C, H, W = 2, 4, 16, 16
    I = jax.random.normal(keys[0], (B, C, H, W), dtype=jnp.float32)
    J = jax.random.normal(keys[1], (B, C, H, W), dtype=jnp.float32)
    weight = 2.0

    out_mean = jax.block_until_ready(mean_square_error(I, J, weight=weight, sum_up=False))
    ref_mean = weight * jnp.mean((I - J) ** 2, axis=(1, 2, 3))
    assert out_mean.shape == (B,)
    assert jnp.allclose(out_mean, ref_mean, rtol=1e-5, atol=1e-5)

    out_sum = jax.block_until_ready(mean_square_error(I, J, weight=weight, sum_up=True))
    ref_sum = weight * jnp.sum((I - J) ** 2, axis=(1, 2, 3))
    assert out_sum.shape == (B,)
    assert jnp.allclose(out_sum, ref_sum, rtol=1e-5, atol=1e-4)

    # Multi-tile / two-chunk / ragged-mask paths at a small size by shrinking
    # the per-block byte budget (F = 3840 -> S = 30, s_tile = 8, 4 tiles).
    B2, C2, H2, W2 = 2, 3, 40, 32
    I2 = jax.random.normal(keys[2], (B2, C2, H2, W2), dtype=jnp.float32)
    J2 = jax.random.normal(keys[3], (B2, C2, H2, W2), dtype=jnp.float32)
    out2 = jax.block_until_ready(
        mean_square_error(I2, J2, weight=0.5, sum_up=False,
                          block_bytes=8 * 1024, num_feature_chunks=2))
    ref2 = 0.5 * jnp.mean((I2 - J2) ** 2, axis=(1, 2, 3))
    assert jnp.allclose(out2, ref2, rtol=1e-5, atol=1e-5)

    # Lane-ragged fallback (F = 105, not a multiple of 128).
    B3, C3, H3, W3 = 2, 3, 7, 5
    I3_ = jax.random.normal(keys[4], (B3, C3, H3, W3), dtype=jnp.float32)
    J3_ = jax.random.normal(keys[5], (B3, C3, H3, W3), dtype=jnp.float32)
    out3 = jax.block_until_ready(mean_square_error(I3_, J3_, weight=1.0, sum_up=True))
    ref3 = jnp.sum((I3_ - J3_) ** 2, axis=(1, 2, 3))
    assert jnp.allclose(out3, ref3, rtol=1e-5, atol=1e-5)

    # Batch-tiling path (B = 20 with an 8-row batch cap -> 3 batch grid steps,
    # partial last batch block).
    B4, C4, H4, W4 = 20, 3, 8, 8
    I4 = jax.random.normal(keys[6], (B4, C4, H4, W4), dtype=jnp.float32)
    J4 = jax.random.normal(keys[7], (B4, C4, H4, W4), dtype=jnp.float32)
    out4 = jax.block_until_ready(
        mean_square_error(I4, J4, weight=1.5, sum_up=False, max_batch_per_block=8))
    ref4 = 1.5 * jnp.mean((I4 - J4) ** 2, axis=(1, 2, 3))
    assert out4.shape == (B4,)
    assert jnp.allclose(out4, ref4, rtol=1e-5, atol=1e-5)

    # bf16 path (cast-before-subtract, 16-row sublane packing alignment).
    I5 = jax.random.normal(keys[8], (B, C, H, W), dtype=jnp.bfloat16)
    J5 = jax.random.normal(keys[9], (B, C, H, W), dtype=jnp.bfloat16)
    out5 = jax.block_until_ready(mean_square_error(I5, J5, weight=1.0, sum_up=False))
    ref5 = jnp.mean((I5.astype(jnp.float32) - J5.astype(jnp.float32)) ** 2, axis=(1, 2, 3))
    assert jnp.allclose(out5.astype(jnp.float32), ref5, rtol=2e-2, atol=2e-2)

    print("KERNEL_OK")
</pallas_src>

<mosaic_0001>
module attributes {stable_mosaic.version = 11 : i64} {
  func.func @_mse_kernel(%arg0: i32, %arg1: i32, %arg2: i32, %arg3: memref<2x8x128xf32, #tpu.memory_space<vmem>>, %arg4: memref<2x8x128xf32, #tpu.memory_space<vmem>>, %arg5: memref<1x2x1xf32, #tpu.memory_space<vmem>>, %arg6: memref<2x1x128xf32, #tpu.memory_space<vmem>>) attributes {dimension_semantics = [#tpu.dimension_semantics<parallel>, #tpu.dimension_semantics<parallel>, #tpu.dimension_semantics<arbitrary>], iteration_bounds = array<i64: 1, 1, 1>, scalar_prefetch = 0 : i64, scratch_operands = 1 : i64, tpu.core_type = #tpu.core_type<tc>, window_params = [{transform_indices = @transform_0, window_bounds = array<i64: 2, 8, 128>}, {transform_indices = @transform_1, window_bounds = array<i64: 2, 8, 128>}, {transform_indices = @transform_2, window_bounds = array<i64: 1, 2, 1>}]} {
    %c0_i32 = arith.constant 0 : i32
    %0 = arith.cmpi eq, %arg2, %c0_i32 : i32
    %1 = arith.extui %0 : i1 to i32
    %c0_i32_0 = arith.constant 0 : i32
    %2 = arith.cmpi ne, %1, %c0_i32_0 : i32
    scf.if %2 {
      %cst_14 = arith.constant 0.000000e+00 : f32
      %15 = vector.broadcast %cst_14 : f32 to vector<2x1x128xf32>
      %c0_15 = arith.constant 0 : index
      %c0_16 = arith.constant 0 : index
      %c0_17 = arith.constant 0 : index
      %16 = vector.load %arg6[%c0_15, %c0_16, %c0_17] : memref<2x1x128xf32, #tpu.memory_space<vmem>>, vector<2x1x128xf32>
      tpu.vector_store %arg6[%c0_15, %c0_16, %c0_17], %15 {strides = array<i32>} : memref<2x1x128xf32, #tpu.memory_space<vmem>>, vector<2x1x128xf32>,
    } else {
    }
    %c0 = arith.constant 0 : index
    %c0_1 = arith.constant 0 : index
    %c0_2 = arith.constant 0 : index
    %3 = vector.load %arg3[%c0, %c0_1, %c0_2] : memref<2x8x128xf32, #tpu.memory_space<vmem>>, vector<2x8x128xf32>
    %c0_3 = arith.constant 0 : index
    %c0_4 = arith.constant 0 : index
    %c0_5 = arith.constant 0 : index
    %4 = vector.load %arg4[%c0_3, %c0_4, %c0_5] : memref<2x8x128xf32, #tpu.memory_space<vmem>>, vector<2x8x128xf32>
    %5 = arith.subf %3, %4 : vector<2x8x128xf32>
    %6 = arith.mulf %5, %5 : vector<2x8x128xf32>
    %c0_6 = arith.constant 0 : index
    %c0_7 = arith.constant 0 : index
    %c0_8 = arith.constant 0 : index
    %7 = vector.load %arg6[%c0_6, %c0_7, %c0_8] : memref<2x1x128xf32, #tpu.memory_space<vmem>>, vector<2x1x128xf32>
    %cst = arith.constant dense<0.000000e+00> : vector<2x128xf32>
    %8 = vector.multi_reduction <add>, %6, %cst [1] : vector<2x8x128xf32> to vector<2x128xf32>
    %9 = vector.shape_cast %8 : vector<2x128xf32> to vector<2x1x128xf32>
    %10 = arith.addf %7, %9 : vector<2x1x128xf32>
    %c0_9 = arith.constant 0 : index
    %c0_10 = arith.constant 0 : index
    %c0_11 = arith.constant 0 : index
    %11 = vector.load %arg6[%c0_9, %c0_10, %c0_11] : memref<2x1x128xf32, #tpu.memory_space<vmem>>, vector<2x1x128xf32>
    tpu.vector_store %arg6[%c0_9, %c0_10, %c0_11], %10 {strides = array<i32>} : memref<2x1x128xf32, #tpu.memory_space<vmem>>, vector<2x1x128xf32>,
    %c0_i32_12 = arith.constant 0 : i32
    %12 = arith.cmpi eq, %arg2, %c0_i32_12 : i32
    %13 = arith.extui %12 : i1 to i32
    %c0_i32_13 = arith.constant 0 : i32
    %14 = arith.cmpi ne, %13, %c0_i32_13 : i32
    scf.if %14 {
      %c0_14 = arith.constant 0 : index
      %c0_15 = arith.constant 0 : index
      %c0_16 = arith.constant 0 : index
      %15 = vector.load %arg6[%c0_14, %c0_15, %c0_16] : memref<2x1x128xf32, #tpu.memory_space<vmem>>, vector<2x1x128xf32>
      %cst_17 = arith.constant dense<0.000000e+00> : vector<2x1xf32>
      %16 = vector.multi_reduction <add>, %15, %cst_17 [2] : vector<2x1x128xf32> to vector<2x1xf32>
      %c0_18 = arith.constant 0 : index
      %c0_19 = arith.constant 0 : index
      %c0_20 = arith.constant 0 : index
      %17 = vector.load %arg5[%c0_18, %c0_19, %c0_20] : memref<1x2x1xf32, #tpu.memory_space<vmem>>, vector<1x2x1xf32>
      %18 = vector.shape_cast %17 : vector<1x2x1xf32> to vector<2x1xf32>
      %19 = vector.shape_cast %16 : vector<2x1xf32> to vector<1x2x1xf32>
      tpu.vector_store %arg5[%c0_18, %c0_19, %c0_20], %19 {strides = array<i32>} : memref<1x2x1xf32, #tpu.memory_space<vmem>>, vector<1x2x1xf32>,
    } else {
    }
    return
  }
  func.func @transform_0(%arg0: i32, %arg1: i32, %arg2: i32) -> (i32, i32, i32) {
    %c1_i32 = arith.constant 1 : i32
    %0 = arith.muli %arg1, %c1_i32 : i32
    %1 = arith.addi %0, %arg2 : i32
    %c0_i32 = arith.constant 0 : i32
    %2 = arith.minsi %1, %c0_i32 : i32
    %c0_i32_0 = arith.constant 0 : i32
    %c0_i32_1 = arith.constant 0 : i32
    return %arg0, %2, %c0_i32_0 : i32, i32, i32
  }
  func.func @transform_1(%arg0: i32, %arg1: i32, %arg2: i32) -> (i32, i32, i32) {
    %c1_i32 = arith.constant 1 : i32
    %0 = arith.muli %arg1, %c1_i32 : i32
    %1 = arith.addi %0, %arg2 : i32
    %c0_i32 = arith.constant 0 : i32
    %2 = arith.minsi %1, %c0_i32 : i32
    %c0_i32_0 = arith.constant 0 : i32
    %c0_i32_1 = arith.constant 0 : i32
    return %arg0, %2, %c0_i32_0 : i32, i32, i32
  }
  func.func @transform_2(%arg0: i32, %arg1: i32, %arg2: i32) -> (i32, i32, i32) {
    %c0_i32 = arith.constant 0 : i32
    %c0_i32_0 = arith.constant 0 : i32
    return %arg1, %arg0, %c0_i32 : i32, i32, i32
  }
}

</mosaic_0001>

<llo_original>
// kernel: tpu_custom_call.1
$region0: #{tpu_custom_call.1}
  #allocation0 [shape = 'u32[]', space=smem, size = 0x4, offset = 0x4, fixed_abs, tag = 'smem constant byte address 0x4 - core index']
  #allocation1 [shape = 'u32[144,128]{1,0:T(1,128)}', space=vmem, size = 0x12000, scoped, tag = 'internal scratch']
  #allocation2 [shape = 'f32[2,1,128]{2,1,0:T(1,128)}', space=vmem, size = 0x400, scoped, tag = 'scratch operand']
  %s0 = inlined_call_operand.hbm [shape: f32[2,8,128], index: 0, kind: input, shape index: {}]
  %s1 = inlined_call_operand.hbm [shape: f32[2,8,128], index: 1, kind: input, shape index: {}]
  %s2 = inlined_call_operand.vmem [shape: f32[1,2,1], index: 2, kind: output, shape index: {}]
  %s3 = sld [smem:[#allocation0]]
  $region34: #{tpu_custom_call.1} parent=0
    _
  %s5 = ssub.s32 1, %s3
  %s6 = scalar_select 0, %s5, %s3
  $region1: #{tpu_custom_call.1} parent=0
    #allocation3 [shape = 'u8[8192]{0}', space=vmem, size = 0x2000, scoped, tag = 'input window, operand 0, single buffered']
    #allocation4 [shape = 's32[1]{0}', space=sflag, size = 0x4, scoped, tag = 'scoped memory for tpu_custom_call.1']
    #allocation5 [shape = 'u8[8192]{0}', space=vmem, size = 0x2000, scoped, tag = 'input window, operand 1, single buffered']
    #allocation6 [shape = 's32[1]{0}', space=sflag, size = 0x4, scoped, tag = 'scoped memory for tpu_custom_call.1']
    %7 = vsyncpa [#allocation4], 0
    %8 = vsyncpa [#allocation6], 0
    // Predicated region
    $region2: #{tpu_custom_call.1} parent=1 // pred_check
      _
    $region3: #{tpu_custom_call.1} parent=1 // pred_check_branch
      %10 = sbr.rel (0) target = $region5
    $region4: #{tpu_custom_call.1} parent=1 // pred_region
      %s11 = sadd.s32 0, 0
      %p12 = scmp.lt.s32.totalorder %s11, 0
      %s13 = scalar_select %p12, %s11, 0
      %s15 = ssub.s32 256, 256
      %16 = vsyncadd [#allocation4], %s15
      %s17 = smul.addr %s13, 128
      %s18 = scalar_lea.hbm %s0, %s17
      %s19 = sshll.u32 [#allocation3], 4
      %s20 = int_to_ptr.vmem [resolvable:$true] %s19
      %25 = dma.hbm_to_vmem [thread:$0]  %s18, 256, %s20, [#allocation4], 128, 128, 8
    $region5: #{tpu_custom_call.1} parent=1 // pred_fallthru
      _
    // Predicated region
    $region6: #{tpu_custom_call.1} parent=1 // pred_check
      _
    $region7: #{tpu_custom_call.1} parent=1 // pred_check_branch
      %27 = sbr.rel (0) target = $region9
    $region8: #{tpu_custom_call.1} parent=1 // pred_region
      %s28 = sadd.s32 0, 0
      %p29 = scmp.lt.s32.totalorder %s28, 0
      %s30 = scalar_select %p29, %s28, 0
      %s32 = ssub.s32 256, 256
      %33 = vsyncadd [#allocation6], %s32
      %s34 = smul.addr %s30, 128
      %s35 = scalar_lea.hbm %s1, %s34
      %s36 = sshll.u32 [#allocation5], 4
      %s37 = int_to_ptr.vmem [resolvable:$true] %s36
      %42 = dma.hbm_to_vmem [thread:$0]  %s35, 256, %s37, [#allocation6], 128, 128, 8
    $region9: #{tpu_custom_call.1} parent=1 // pred_fallthru
      _
    // Predicated region
    $region10: #{tpu_custom_call.1} parent=1 // pred_check
      _
    $region11: #{tpu_custom_call.1} parent=1 // pred_check_branch
      %44 = sbr.rel (0) target = $region13
    $region12: #{tpu_custom_call.1} parent=1 // pred_region
      %45 = dma.done [#allocation4], 256
    $region13: #{tpu_custom_call.1} parent=1 // pred_fallthru
      _
    // Predicated region
    $region14: #{tpu_custom_call.1} parent=1 // pred_check
      _
    $region15: #{tpu_custom_call.1} parent=1 // pred_check_branch
      %47 = sbr.rel (0) target = $region17
    $region16: #{tpu_custom_call.1} parent=1 // pred_region
      %48 = dma.done [#allocation6], 256
    $region17: #{tpu_custom_call.1} parent=1 // pred_fallthru
      _
    %s49 = sadd.s32 0, 0
    %p50 = scmp.lt.s32.totalorder %s49, 0
    %s51 = scalar_select %p50, %s49, 0
    %s52 = sadd.s32 0, 0
    %p53 = scmp.lt.s32.totalorder %s52, 0
    %s54 = scalar_select %p53, %s52, 0
    %p55 = scmp.eq.s32.totalorder 0, 0
    // Predicated region
    $region18: #{tpu_custom_call.1} parent=1 // pred_check
      %p56 = pneg %p55
    $region19: #{tpu_custom_call.1} parent=1 // pred_check_branch
      %58 = sbr.rel (%p56) target = $region21
    $region20: #{tpu_custom_call.1} parent=1 // pred_region
      %59 = vst [vmem:[#allocation2] sm:$0x1] 0.0
      %60 = vst [vmem:[#allocation2 + $0x1] sm:$0x1] 0.0
    $region21: #{tpu_custom_call.1} parent=1 // pred_fallthru
      _
    %v61 = vld [vmem:[#allocation3] sm:$0xff]
    %v62 = vld [vmem:[#allocation3 + $0x8] sm:$0xff]
    %v63 = vld [vmem:[#allocation5] sm:$0xff]
    %v64 = vld [vmem:[#allocation5 + $0x8] sm:$0xff]
    %v65 = vsub.f32 %v61, %v63
    %v66 = vsub.f32 %v62, %v64
    %v67 = vmul.f32 %v65, %v65
    %v68 = vmul.f32 %v66, %v66
    %v69 = vld [vmem:[#allocation2] sm:$0x1]
    %v70 = vld [vmem:[#allocation2 + $0x1] sm:$0x1]
    %v71 = vrot.slane %v67, 4
    %v72 = vadd.f32 %v67, %v71
    %v73 = vrot.slane %v72, 2
    %v74 = vadd.f32 %v72, %v73
    %v75 = vrot.slane %v74, 1
    %v76 = vadd.f32 %v74, %v75
    %v77 = vrot.slane %v68, 4
    %v78 = vadd.f32 %v68, %v77
    %v79 = vrot.slane %v78, 2
    %v80 = vadd.f32 %v78, %v79
    %v81 = vrot.slane %v80, 1
    %v82 = vadd.f32 %v80, %v81
    %v83 = vadd.f32 %v69, %v76
    %v84 = vadd.f32 %v70, %v82
    %85 = vst [vmem:[#allocation2] sm:$0x1] %v83
    %86 = vst [vmem:[#allocation2 + $0x1] sm:$0x1] %v84
    // Predicated region
    $region22: #{tpu_custom_call.1} parent=1 // pred_check
      %p87 = pneg %p55
    $region23: #{tpu_custom_call.1} parent=1 // pred_check_branch
      %89 = sbr.rel (%p87) target = $region25
    $region24: #{tpu_custom_call.1} parent=1 // pred_region
      %v90 = vld [vmem:[#allocation2] sm:$0x1]
      %v91 = vld [vmem:[#allocation2 + $0x1] sm:$0x1]
      %vm92 = vcmask 1040384
      %v93 = vsel %vm92, %v90, 0.0
      %94 = vadd.xlane.f32.xlu0 %v93
      %v95 = vpop.xlane.xlu0 %94
      %v96 = vsel %vm92, %v91, 0.0
      %97 = vadd.xlane.f32.xlu0 %v96
      %v98 = vpop.xlane.xlu0 %97
      %v101 = vrot.slane %v98, 7
      %vm102 = vcmask 1041409
      %v103 = vsel %vm102, %v101, %v95
      %vm105 = vcmask 1024
      %106 = vst.msk [vmem:[%s2] sm:$0x3] %vm105, %v103
    $region25: #{tpu_custom_call.1} parent=1 // pred_fallthru
      _
    // Predicated region
    $region26: #{tpu_custom_call.1} parent=1 // pred_check
      _
    $region27: #{tpu_custom_call.1} parent=1 // pred_check_branch
      %108 = sbr.rel (0) target = $region29
    $region28: #{tpu_custom_call.1} parent=1 // pred_region
      _
    $region29: #{tpu_custom_call.1} parent=1 // pred_fallthru
      _
    // Predicated region
    $region30: #{tpu_custom_call.1} parent=1 // pred_check
      _
    $region31: #{tpu_custom_call.1} parent=1 // pred_check_branch
      %110 = sbr.rel (0) target = $region33
    $region32: #{tpu_custom_call.1} parent=1 // pred_region
      _
    $region33: #{tpu_custom_call.1} parent=1 // pred_fallthru
      _
    %111 = vsyncpa [#allocation4], 1
    %112 = vsyncpa [#allocation6], 1

</llo_original>
